<compile_context>
chip_gen: v6e
topology: v6e:2x2x1
jax: 0.10.0
libtpu: 0.0.40
codegen_flags: <defaults>
</compile_context>

<pallas_src>
import jax
import jax.numpy as jnp
from jax.experimental import pallas as pl
from jax.experimental.pallas import tpu as pltpu


def _round_up(v, m):
    return (v + m - 1) // m * m


# ---------------------------------------------------------------------------
# Kernel 1: fold the FourierFT adapter into the base weight (runs once per forward)
#   w_eff[:, j_blk] = W^T[:, j_blk] + M @ (S_scaled @ M^T[:, j_blk])
# S already carries `scale`, M^T is an explicit input (natural (1,0) contraction, no XLU transpose).
# Output is emitted directly in bf16 for the MXU in kernel 2.
# ---------------------------------------------------------------------------
def _fold_weight_kernel(wt_ref, s_ref, m_ref, mt_ref, weff_ref):
    tmp = jnp.dot(s_ref[...], mt_ref[...], preferred_element_type=jnp.float32)   # (IN_p, tn)
    delta = jnp.dot(m_ref[...], tmp, preferred_element_type=jnp.float32)         # (IN_p, tn)
    weff_ref[...] = (wt_ref[...] + delta).astype(weff_ref.dtype)


# ---------------------------------------------------------------------------
# Kernel 2: tiled  out = x @ w_eff + b   (bf16 operands, f32 accumulation)
# grid = (BS/tm, OUT/tn, IN/tk); accumulator in VMEM scratch; bias added in the finalize step only.
# ---------------------------------------------------------------------------
def _matmul_bias_kernel(x_ref, w_ref, b_ref, o_ref, acc_ref):
    @pl.when(pl.program_id(2) == 0)
    def _():
        acc_ref[...] = jnp.zeros_like(acc_ref)

    acc_ref[...] += jnp.dot(x_ref[...], w_ref[...], preferred_element_type=jnp.float32)

    @pl.when(pl.program_id(2) == pl.num_programs(2) - 1)
    def _():
        o_ref[...] = (acc_ref[...] + b_ref[...]).astype(o_ref.dtype)


def fourier_linear(x, w, b, dense_s_scaled, idct_mat, *, compute_dtype=jnp.bfloat16):
    """x: (B, S, IN); w: (OUT, IN) base nn.Linear weight; b: (OUT,);
       dense_s_scaled: (IN, IN) scattered spectrum with `scale` already folded in;
       idct_mat: (IN, IN) 1-D IDCT basis M (idct2(S) = M @ S @ M^T)."""
    B, S, IN = x.shape
    OUT, IN_w = w.shape
    assert IN_w == IN, "weight in_features must match activation feature dim"
    assert OUT == IN, "FourierFT delta_w is (in,in); module requires out_features == in_features"
    BS = B * S
    out_dtype = x.dtype

    # --- MXU / lane aligned tile sizes (full-dim fallback for small shapes) ---
    tm = 128 if BS >= 128 else _round_up(BS, 8)
    tn = 256 if OUT >= 256 else 128
    tk = 512 if IN >= 512 else _round_up(IN, 128)

    BS_p = _round_up(BS, tm)
    OUT_p = _round_up(OUT, tn)
    IN_p = _round_up(IN, tk)

    # --- zero-pad to lane/sublane-dense shapes (mathematically inert) ---
    x2d = jnp.pad(x.reshape(BS, IN), ((0, BS_p - BS), (0, IN_p - IN)))
    wt_p = jnp.pad(w.T.astype(jnp.float32), ((0, IN_p - IN), (0, OUT_p - OUT)))     # (IN_p, OUT_p)
    b_p = jnp.pad(b.reshape(1, OUT).astype(jnp.float32), ((0, 0), (0, OUT_p - OUT)))
    s_p = jnp.pad(dense_s_scaled.astype(jnp.float32), ((0, IN_p - IN), (0, IN_p - IN)))
    m_p = jnp.pad(idct_mat.astype(jnp.float32), ((0, IN_p - IN), (0, IN_p - IN)))   # M
    mt_p = jnp.pad(idct_mat.T.astype(jnp.float32), ((0, IN_p - IN), (0, OUT_p - IN)))  # M^T

    # ---- Kernel 1: fold adapter into the base weight (once per forward) ----
    w_eff = pl.pallas_call(
        _fold_weight_kernel,
        out_shape=jax.ShapeDtypeStruct((IN_p, OUT_p), compute_dtype),
        grid_spec=pltpu.PrefetchScalarGridSpec(
            num_scalar_prefetch=0,
            grid=(OUT_p // tn,),
            in_specs=[
                pl.BlockSpec((IN_p, tn), lambda j: (0, j)),     # W^T column block
                pl.BlockSpec((IN_p, IN_p), lambda j: (0, 0)),   # S (scale folded in)
                pl.BlockSpec((IN_p, IN_p), lambda j: (0, 0)),   # M
                pl.BlockSpec((IN_p, tn), lambda j: (0, j)),     # M^T column block
            ],
            out_specs=pl.BlockSpec((IN_p, tn), lambda j: (0, j)),
        ),
        compiler_params=pltpu.CompilerParams(
            dimension_semantics=("parallel",)),
    )(wt_p, s_p, m_p, mt_p)
    # TODO(synk): for very large in_features the resident (IN_p, IN_p) S / M blocks should also be
    # K-tiled; at adapter-scale feature sizes they fit VMEM and this fold runs once per forward.

    # ---- Kernel 2: single fused activation matmul  out = x @ w_eff + b ----
    out2d = pl.pallas_call(
        _matmul_bias_kernel,
        out_shape=jax.ShapeDtypeStruct((BS_p, OUT_p), out_dtype),
        grid_spec=pltpu.PrefetchScalarGridSpec(
            num_scalar_prefetch=0,
            grid=(BS_p // tm, OUT_p // tn, IN_p // tk),
            in_specs=[
                pl.BlockSpec((tm, tk), lambda i, j, k: (i, k)),   # x tile
                pl.BlockSpec((tk, tn), lambda i, j, k: (k, j)),   # w_eff tile
                pl.BlockSpec((1, tn), lambda i, j, k: (0, j)),    # bias tile
            ],
            out_specs=pl.BlockSpec((tm, tn), lambda i, j, k: (i, j)),
            scratch_shapes=[pltpu.VMEM((tm, tn), jnp.float32)],
        ),
        compiler_params=pltpu.CompilerParams(
            dimension_semantics=("parallel", "parallel", "arbitrary")),
    )(x2d.astype(compute_dtype), w_eff, b_p)

    return out2d[:BS, :OUT].reshape(B, S, OUT)


def make_idct_matrix(N):
    """1-D inverse-DCT basis M with torch_dct idct(norm=None) semantics:
       x[n] = (1/N) * (X[0]/2 + sum_{k>=1} X[k] cos(pi*(n+0.5)*k/N))  ->  x = X @ M^T."""
    n = jnp.arange(N, dtype=jnp.float32)[:, None]
    k = jnp.arange(N, dtype=jnp.float32)[None, :]
    coeff = jnp.where(k == 0, 0.5, 1.0)
    return (coeff * jnp.cos(jnp.pi * (n + 0.5) * k / N)) / N


if __name__ == "__main__":
    B, S, HID = 2, 8, 32          # batch, seq, in_features == out_features
    N_FREQ, SCALE = 16, 0.1

    key = jax.random.PRNGKey(0)
    kx, kw, kb, kp, ks = jax.random.split(key, 5)

    # Inputs / deterministic "parameters" (module __init__ shapes).
    x = jax.random.normal(kx, (B, S, HID), jnp.float32)
    w = jax.random.normal(kw, (HID, HID), jnp.float32) * 0.05   # base nn.Linear weight (out, in)
    b = jax.random.normal(kb, (HID,), jnp.float32) * 0.01       # base nn.Linear bias
    perm = jax.random.permutation(kp, HID * HID)[:N_FREQ]       # randperm(in*in)[:n_frequency]
    rows, cols = perm // HID, perm % HID                        # indices[0], indices[1]
    spectrum = jax.random.normal(ks, (N_FREQ,), jnp.float32)    # nn.Parameter(torch.randn(n_frequency))

    # Glue: scatter spectrum (with `scale` folded in, per perf review) + IDCT basis.
    dense_s_scaled = jnp.zeros((HID, HID), jnp.float32).at[rows, cols].set(spectrum * SCALE)
    idct_mat = make_idct_matrix(HID)

    out = fourier_linear(x, w, b, dense_s_scaled, idct_mat)
    out = jax.block_until_ready(out)

    # Plain-JAX reference for sanity (f32; kernel uses bf16 MXU operands, hence loose tolerance).
    delta_w = idct_mat @ dense_s_scaled @ idct_mat.T            # scale already inside dense_s
    ref = jnp.einsum("bsi,oi->bso", x, w) + b + jnp.einsum("bsk,kl->bsl", x, delta_w)
    assert jnp.allclose(out, ref, rtol=5e-2, atol=5e-2), "mismatch vs reference"

    # TODO(synk): self.delta_w_stats (mean/var of delta_w before/after scaling) and the
    # gradient-flow prints are host-side module attributes / side effects; they do not affect
    # the returned tensor and are omitted.
    print("KERNEL_OK")
</pallas_src>

<mosaic_0001>
module attributes {stable_mosaic.version = 11 : i64} {
  func.func @_fold_weight_kernel(%arg0: i32, %arg1: memref<128x128xf32, #tpu.memory_space<vmem>>, %arg2: memref<128x128xf32, #tpu.memory_space<vmem>>, %arg3: memref<128x128xf32, #tpu.memory_space<vmem>>, %arg4: memref<128x128xf32, #tpu.memory_space<vmem>>, %arg5: memref<128x128xbf16, #tpu.memory_space<vmem>>) attributes {dimension_semantics = [#tpu.dimension_semantics<parallel>], iteration_bounds = array<i64: 1>, scalar_prefetch = 0 : i64, scratch_operands = 0 : i64, tpu.core_type = #tpu.core_type<tc>, window_params = [{transform_indices = @transform_0, window_bounds = array<i64: 128, 128>}, {pipeline_mode = #tpu.pipeline_mode<synchronous>, transform_indices = @transform_1, window_bounds = array<i64: 128, 128>}, {pipeline_mode = #tpu.pipeline_mode<synchronous>, transform_indices = @transform_2, window_bounds = array<i64: 128, 128>}, {transform_indices = @transform_3, window_bounds = array<i64: 128, 128>}, {transform_indices = @transform_4, window_bounds = array<i64: 128, 128>}]} {
    %c0 = arith.constant 0 : index
    %c0_0 = arith.constant 0 : index
    %0 = vector.load %arg2[%c0, %c0_0] : memref<128x128xf32, #tpu.memory_space<vmem>>, vector<128x128xf32>
    %c0_1 = arith.constant 0 : index
    %c0_2 = arith.constant 0 : index
    %1 = vector.load %arg4[%c0_1, %c0_2] : memref<128x128xf32, #tpu.memory_space<vmem>>, vector<128x128xf32>
    %cst = arith.constant dense<0.000000e+00> : vector<128x128xf32>
    %2 = tpu.matmul %0, %1, %cst {dimension_numbers = #tpu.dot_dimension_numbers<[1], [0], [0], [1], [0, 0, 1, 1], [], []>} : vector<128x128xf32>, vector<128x128xf32>, vector<128x128xf32> -> vector<128x128xf32>
    %c0_3 = arith.constant 0 : index
    %c0_4 = arith.constant 0 : index
    %3 = vector.load %arg3[%c0_3, %c0_4] : memref<128x128xf32, #tpu.memory_space<vmem>>, vector<128x128xf32>
    %cst_5 = arith.constant dense<0.000000e+00> : vector<128x128xf32>
    %4 = tpu.matmul %3, %2, %cst_5 {dimension_numbers = #tpu.dot_dimension_numbers<[1], [0], [0], [1], [0, 0, 1, 1], [], []>} : vector<128x128xf32>, vector<128x128xf32>, vector<128x128xf32> -> vector<128x128xf32>
    %c0_6 = arith.constant 0 : index
    %c0_7 = arith.constant 0 : index
    %5 = vector.load %arg1[%c0_6, %c0_7] : memref<128x128xf32, #tpu.memory_space<vmem>>, vector<128x128xf32>
    %6 = arith.addf %5, %4 : vector<128x128xf32>
    %7 = arith.truncf %6 : vector<128x128xf32> to vector<128x128xbf16>
    %c0_8 = arith.constant 0 : index
    %c0_9 = arith.constant 0 : index
    %8 = vector.load %arg5[%c0_8, %c0_9] : memref<128x128xbf16, #tpu.memory_space<vmem>>, vector<128x128xbf16>
    tpu.vector_store %arg5[%c0_8, %c0_9], %7 {strides = array<i32>} : memref<128x128xbf16, #tpu.memory_space<vmem>>, vector<128x128xbf16>,
    return
  }
  func.func @transform_0(%arg0: i32) -> (i32, i32) {
    %c0_i32 = arith.constant 0 : i32
    %c0_i32_0 = arith.constant 0 : i32
    return %c0_i32, %arg0 : i32, i32
  }
  func.func @transform_1(%arg0: i32) -> (i32, i32) {
    %c0_i32 = arith.constant 0 : i32
    %c0_i32_0 = arith.constant 0 : i32
    %c0_i32_1 = arith.constant 0 : i32
    return %c0_i32, %c0_i32_0 : i32, i32
  }
  func.func @transform_2(%arg0: i32) -> (i32, i32) {
    %c0_i32 = arith.constant 0 : i32
    %c0_i32_0 = arith.constant 0 : i32
    %c0_i32_1 = arith.constant 0 : i32
    return %c0_i32, %c0_i32_0 : i32, i32
  }
  func.func @transform_3(%arg0: i32) -> (i32, i32) {
    %c0_i32 = arith.constant 0 : i32
    %c0_i32_0 = arith.constant 0 : i32
    return %c0_i32, %arg0 : i32, i32
  }
  func.func @transform_4(%arg0: i32) -> (i32, i32) {
    %c0_i32 = arith.constant 0 : i32
    %c0_i32_0 = arith.constant 0 : i32
    return %c0_i32, %arg0 : i32, i32
  }
}

</mosaic_0001>

<llo_original>
// kernel: tpu_custom_call.1
$region0: #{tpu_custom_call.1}
  #allocation0 [shape = 'u32[]', space=smem, size = 0x4, offset = 0x4, fixed_abs, tag = 'smem constant byte address 0x4 - core index']
  #allocation1 [shape = 'u32[144,128]{1,0:T(1,128)}', space=vmem, size = 0x12000, scoped, tag = 'internal scratch']
  %s0 = inlined_call_operand.hbm [shape: f32[128,128], index: 0, kind: input, shape index: {}]
  %s1 = inlined_call_operand.hbm [shape: f32[128,128], index: 1, kind: input, shape index: {}]
  %s2 = inlined_call_operand.hbm [shape: f32[128,128], index: 2, kind: input, shape index: {}]
  %s3 = inlined_call_operand.hbm [shape: f32[128,128], index: 3, kind: input, shape index: {}]
  %s4 = inlined_call_operand.hbm [shape: bf16[128,128], index: 4, kind: output, shape index: {}]
  %s5 = sld [smem:[#allocation0]]
  $region42: #{tpu_custom_call.1} parent=0
    _
  %s7 = ssub.s32 1, %s5
  %s8 = scalar_select 0, %s7, %s5
  $region1: #{tpu_custom_call.1} parent=0
    #allocation2 [shape = 'u8[65536]{0}', space=vmem, size = 0x10000, scoped, tag = 'input window, operand 0, single buffered']
    #allocation3 [shape = 's32[1]{0}', space=sflag, size = 0x4, scoped, tag = 'scoped memory for tpu_custom_call.1']
    #allocation4 [shape = 's32[1]{0}', space=sflag, size = 0x4, scoped, tag = 'scoped memory for tpu_custom_call.1']
    #allocation5 [shape = 'u8[65536]{0}', space=vmem, size = 0x10000, scoped, tag = 'input window, operand 1, single buffered']
    #allocation6 [shape = 's32[1]{0}', space=sflag, size = 0x4, scoped, tag = 'scoped memory for tpu_custom_call.1']
    #allocation7 [shape = 'u8[65536]{0}', space=vmem, size = 0x10000, scoped, tag = 'input window, operand 2, single buffered']
    #allocation8 [shape = 'u8[65536]{0}', space=vmem, size = 0x10000, scoped, tag = 'input window, operand 3, single buffered']
    #allocation9 [shape = 's32[1]{0}', space=sflag, size = 0x4, scoped, tag = 'scoped memory for tpu_custom_call.1']
    #allocation10 [shape = 'u8[32768]{0}', space=vmem, size = 0x8000, scoped, tag = 'output window, operand 0, single buffered']
    %9 = vsyncpa [#allocation3], 0
    %10 = vsyncpa [#allocation6], 0
    %11 = vsyncpa [#allocation9], 0
    %12 = vsyncpa [#allocation4], 0
    // Predicated region
    $region2: #{tpu_custom_call.1} parent=1 // pred_check
      _
    $region3: #{tpu_custom_call.1} parent=1 // pred_check_branch
      %14 = sbr.rel (0) target = $region5
    $region4: #{tpu_custom_call.1} parent=1 // pred_region
      %s16 = ssub.s32 2048, 2048
      %17 = vsyncadd [#allocation3], %s16
      %s18 = sshll.u32 [#allocation2], 4
      %s19 = int_to_ptr.vmem [resolvable:$true] %s18
      %24 = dma.hbm_to_vmem [thread:$0]  %s0, 2048, %s19, [#allocation3], 128, 128, 8
    $region5: #{tpu_custom_call.1} parent=1 // pred_fallthru
      _
    // Predicated region
    $region6: #{tpu_custom_call.1} parent=1 // pred_check
      _
    $region7: #{tpu_custom_call.1} parent=1 // pred_check_branch
      %26 = sbr.rel (0) target = $region9
    $region8: #{tpu_custom_call.1} parent=1 // pred_region
      %s28 = ssub.s32 2048, 2048
      %29 = vsyncadd [#allocation6], %s28
      %s30 = sshll.u32 [#allocation5], 4
      %s31 = int_to_ptr.vmem [resolvable:$true] %s30
      %36 = dma.hbm_to_vmem [thread:$0]  %s1, 2048, %s31, [#allocation6], 128, 128, 8
    $region9: #{tpu_custom_call.1} parent=1 // pred_fallthru
      _
    // Predicated region
    $region10: #{tpu_custom_call.1} parent=1 // pred_check
      _
    $region11: #{tpu_custom_call.1} parent=1 // pred_check_branch
      %38 = sbr.rel (0) target = $region13
    $region12: #{tpu_custom_call.1} parent=1 // pred_region
      %s40 = ssub.s32 2048, 2048
      %41 = vsyncadd [#allocation6], %s40
      %s42 = sshll.u32 [#allocation7], 4
      %s43 = int_to_ptr.vmem [resolvable:$true] %s42
      %48 = dma.hbm_to_vmem [thread:$0]  %s2, 2048, %s43, [#allocation6], 128, 128, 8
    $region13: #{tpu_custom_call.1} parent=1 // pred_fallthru
      _
    // Predicated region
    $region14: #{tpu_custom_call.1} parent=1 // pred_check
      _
    $region15: #{tpu_custom_call.1} parent=1 // pred_check_branch
      %50 = sbr.rel (0) target = $region17
    $region16: #{tpu_custom_call.1} parent=1 // pred_region
      %s52 = ssub.s32 2048, 2048
      %53 = vsyncadd [#allocation9], %s52
      %s54 = sshll.u32 [#allocation8], 4
      %s55 = int_to_ptr.vmem [resolvable:$true] %s54
      %60 = dma.hbm_to_vmem [thread:$0]  %s3, 2048, %s55, [#allocation9], 128, 128, 8
    $region17: #{tpu_custom_call.1} parent=1 // pred_fallthru
      _
    // Predicated region
    $region18: #{tpu_custom_call.1} parent=1 // pred_check
      _
    $region19: #{tpu_custom_call.1} parent=1 // pred_check_branch
      %62 = sbr.rel (0) target = $region21
    $region20: #{tpu_custom_call.1} parent=1 // pred_region
      %63 = dma.done [#allocation3], 2048
    $region21: #{tpu_custom_call.1} parent=1 // pred_fallthru
      _
    // Predicated region
    $region22: #{tpu_custom_call.1} parent=1 // pred_check
      _
    $region23: #{tpu_custom_call.1} parent=1 // pred_check_branch
      %65 = sbr.rel (0) target = $region25
    $region24: #{tpu_custom_call.1} parent=1 // pred_region
      %66 = dma.done [#allocation6], 2048
    $region25: #{tpu_custom_call.1} parent=1 // pred_fallthru
      _
    // Predicated region
    $region26: #{tpu_custom_call.1} parent=1 // pred_check
      _
    $region27: #{tpu_custom_call.1} parent=1 // pred_check_branch
      %68 = sbr.rel (0) target = $region29
    $region28: #{tpu_custom_call.1} parent=1 // pred_region
      %69 = dma.done [#allocation6], 2048
    $region29: #{tpu_custom_call.1} parent=1 // pred_fallthru
      _
    // Predicated region
    $region30: #{tpu_custom_call.1} parent=1 // pred_check
      _
    $region31: #{tpu_custom_call.1} parent=1 // pred_check_branch
      %71 = sbr.rel (0) target = $region33
    $region32: #{tpu_custom_call.1} parent=1 // pred_region
      %72 = dma.done [#allocation9], 2048
    $region33: #{tpu_custom_call.1} parent=1 // pred_fallthru
      _
    %v73 = vld [vmem:[#allocation5] sm:$0xff]
    %v74 = vld [vmem:[#allocation5 + $0x8] sm:$0xff]
    %v75 = vld [vmem:[#allocation5 + $0x10] sm:$0xff]
    %v76 = vld [vmem:[#allocation5 + $0x18] sm:$0xff]
    %v77 = vld [vmem:[#allocation5 + $0x20] sm:$0xff]
    %v78 = vld [vmem:[#allocation5 + $0x28] sm:$0xff]
    %v79 = vld [vmem:[#allocation5 + $0x30] sm:$0xff]
    %v80 = vld [vmem:[#allocation5 + $0x38] sm:$0xff]
    %v81 = vld [vmem:[#allocation5 + $0x40] sm:$0xff]
    %v82 = vld [vmem:[#allocation5 + $0x48] sm:$0xff]
    %v83 = vld [vmem:[#allocation5 + $0x50] sm:$0xff]
    %v84 = vld [vmem:[#allocation5 + $0x58] sm:$0xff]
    %v85 = vld [vmem:[#allocation5 + $0x60] sm:$0xff]
    %v86 = vld [vmem:[#allocation5 + $0x68] sm:$0xff]
    %v87 = vld [vmem:[#allocation5 + $0x70] sm:$0xff]
    %v88 = vld [vmem:[#allocation5 + $0x78] sm:$0xff]
    %v89 = vld [vmem:[#allocation8] sm:$0xff]
    %v90 = vld [vmem:[#allocation8 + $0x8] sm:$0xff]
    %v91 = vld [vmem:[#allocation8 + $0x10] sm:$0xff]
    %v92 = vld [vmem:[#allocation8 + $0x18] sm:$0xff]
    %v93 = vld [vmem:[#allocation8 + $0x20] sm:$0xff]
    %v94 = vld [vmem:[#allocation8 + $0x28] sm:$0xff]
    %v95 = vld [vmem:[#allocation8 + $0x30] sm:$0xff]
    %v96 = vld [vmem:[#allocation8 + $0x38] sm:$0xff]
    %v97 = vld [vmem:[#allocation8 + $0x40] sm:$0xff]
    %v98 = vld [vmem:[#allocation8 + $0x48] sm:$0xff]
    %v99 = vld [vmem:[#allocation8 + $0x50] sm:$0xff]
    %v100 = vld [vmem:[#allocation8 + $0x58] sm:$0xff]
    %v101 = vld [vmem:[#allocation8 + $0x60] sm:$0xff]
    %v102 = vld [vmem:[#allocation8 + $0x68] sm:$0xff]
    %v103 = vld [vmem:[#allocation8 + $0x70] sm:$0xff]
    %v104 = vld [vmem:[#allocation8 + $0x78] sm:$0xff]
    %105 = vmatprep.subr.mxu0 0.0
    %106 = vmatpush1.msra.mxu0 %v104
    %107 = vmatprep.subr.mxu0 0.0
    %108 = vmatpush1.msra.mxu0 %v103
    %109 = vmatprep.subr.mxu0 0.0
    %110 = vmatpush1.msra.mxu0 %v102
    %111 = vmatprep.subr.mxu0 0.0
    %112 = vmatpush1.msra.mxu0 %v101
    %113 = vmatprep.subr.mxu0 0.0
    %114 = vmatpush1.msra.mxu0 %v100
    %115 = vmatprep.subr.mxu0 0.0
    %116 = vmatpush1.msra.mxu0 %v99
    %117 = vmatprep.subr.mxu0 0.0
    %118 = vmatpush1.msra.mxu0 %v98
    %119 = vmatprep.subr.mxu0 0.0
    %120 = vmatpush1.msra.mxu0 %v97
    %121 = vmatprep.subr.mxu0 0.0
    %122 = vmatpush1.msra.mxu0 %v96
    %123 = vmatprep.subr.mxu0 0.0
    %124 = vmatpush1.msra.mxu0 %v95
    %125 = vmatprep.subr.mxu0 0.0
    %126 = vmatpush1.msra.mxu0 %v94
    %127 = vmatprep.subr.mxu0 0.0
    %128 = vmatpush1.msra.mxu0 %v93
    %129 = vmatprep.subr.mxu0 0.0
    %130 = vmatpush1.msra.mxu0 %v92
    %131 = vmatprep.subr.mxu0 0.0
    %132 = vmatpush1.msra.mxu0 %v91
    %133 = vmatprep.subr.mxu0 0.0
    %134 = vmatpush1.msra.mxu0 %v90
    %135 = vmatprep.subr.mxu0 0.0
    %136 = vmatpush1.msra.mxu0 %v89
    %137 = vmatprep.subr.mxu0 0.0
    %138 = vmatpush2.msra.mxu0 0.0
    %139 = vmatprep.subr.mxu0 0.0
    %140 = vmatpush2.msra.mxu0 0.0
    %141 = vmatprep.subr.mxu0 0.0
    %142 = vmatpush2.msra.mxu0 0.0
    %143 = vmatprep.subr.mxu0 0.0
    %144 = vmatpush2.msra.mxu0 0.0
    %145 = vmatprep.subr.mxu0 0.0
    %146 = vmatpush2.msra.mxu0 0.0
    %147 = vmatprep.subr.mxu0 0.0
    %148 = vmatpush2.msra.mxu0 0.0
    %149 = vmatprep.subr.mxu0 0.0
    %150 = vmatpush2.msra.mxu0 0.0
    %151 = vmatprep.subr.mxu0 0.0
    %152 = vmatpush2.msra.mxu0 0.0
    %153 = vmatprep.subr.mxu0 0.0
    %154 = vmatpush2.msra.mxu0 0.0
    %155 = vmatprep.subr.mxu0 0.0
    %156 = vmatpush2.msra.mxu0 0.0
    %157 = vmatprep.subr.mxu0 0.0
    %158 = vmatpush2.msra.mxu0 0.0
    %159 = vmatprep.subr.mxu0 0.0
    %160 = vmatpush2.msra.mxu0 0.0
    %161 = vmatprep.subr.mxu0 0.0
    %162 = vmatpush2.msra.mxu0 0.0
    %163 = vmatprep.subr.mxu0 0.0
    %164 = vmatpush2.msra.mxu0 0.0
    %165 = vmatprep.subr.mxu0 0.0
    %166 = vmatpush2.msra.mxu0 0.0
    %167 = vmatprep.subr.mxu0 0.0
    %168 = vmatpush2.msra.mxu0 0.0
    %169 = vmatprep.mubr.f32.mxu0 0.0
    %170 = vmatmul.mubr.f32.gmra.mxu0 %v73
    %v171 = vpop.f32.mrf.mxu0
    %v172 = vadd.f32 0.0, %v171
    %v173 = vpop.f32.mrf.mxu0
    %174 = vmatprep.mubr.f32.mxu0 0.0
    %175 = vmatmul.mubr.f32.gmra.mxu0 %v74
    %v176 = vpop.f32.mrf.mxu0
    %v177 = vadd.f32 0.0, %v176
    %v178 = vpop.f32.mrf.mxu0
    %179 = vmatprep.mubr.f32.mxu0 0.0
    %180 = vmatmul.mubr.f32.gmra.mxu0 %v75
    %v181 = vpop.f32.mrf.mxu0
    %v182 = vadd.f32 0.0, %v181
    %v183 = vpop.f32.mrf.mxu0
    %184 = vmatprep.mubr.f32.mxu0 0.0
    %185 = vmatmul.mubr.f32.gmra.mxu0 %v76
    %v186 = vpop.f32.mrf.mxu0
    %v187 = vadd.f32 0.0, %v186
    %v188 = vpop.f32.mrf.mxu0
    %189 = vmatprep.mubr.f32.mxu0 0.0
    %190 = vmatmul.mubr.f32.gmra.mxu0 %v77
    %v191 = vpop.f32.mrf.mxu0
    %v192 = vadd.f32 0.0, %v191
    %v193 = vpop.f32.mrf.mxu0
    %194 = vmatprep.mubr.f32.mxu0 0.0
    %195 = vmatmul.mubr.f32.gmra.mxu0 %v78
    %v196 = vpop.f32.mrf.mxu0
    %v197 = vadd.f32 0.0, %v196
    %v198 = vpop.f32.mrf.mxu0
    %199 = vmatprep.mubr.f32.mxu0 0.0
    %200 = vmatmul.mubr.f32.gmra.mxu0 %v79
    %v201 = vpop.f32.mrf.mxu0
    %v202 = vadd.f32 0.0, %v201
    %v203 = vpop.f32.mrf.mxu0
    %204 = vmatprep.mubr.f32.mxu0 0.0
    %205 = vmatmul.mubr.f32.gmra.mxu0 %v80
    %v206 = vpop.f32.mrf.mxu0
    %v207 = vadd.f32 0.0, %v206
    %v208 = vpop.f32.mrf.mxu0
    %209 = vmatprep.mubr.f32.mxu0 0.0
    %210 = vmatmul.mubr.f32.gmra.mxu0 %v81
    %v211 = vpop.f32.mrf.mxu0
    %v212 = vadd.f32 0.0, %v211
    %v213 = vpop.f32.mrf.mxu0
    %214 = vmatprep.mubr.f32.mxu0 0.0
    %215 = vmatmul.mubr.f32.gmra.mxu0 %v82
    %v216 = vpop.f32.mrf.mxu0
    %v217 = vadd.f32 0.0, %v216
    %v218 = vpop.f32.mrf.mxu0
    %219 = vmatprep.mubr.f32.mxu0 0.0
    %220 = vmatmul.mubr.f32.gmra.mxu0 %v83
    %v221 = vpop.f32.mrf.mxu0
    %v222 = vadd.f32 0.0, %v221
    %v223 = vpop.f32.mrf.mxu0
    %224 = vmatprep.mubr.f32.mxu0 0.0
    %225 = vmatmul.mubr.f32.gmra.mxu0 %v84
    %v226 = vpop.f32.mrf.mxu0
    %v227 = vadd.f32 0.0, %v226
    %v228 = vpop.f32.mrf.mxu0
    %229 = vmatprep.mubr.f32.mxu0 0.0
    %230 = vmatmul.mubr.f32.gmra.mxu0 %v85
    %v231 = vpop.f32.mrf.mxu0
    %v232 = vadd.f32 0.0, %v231
    %v233 = vpop.f32.mrf.mxu0
    %234 = vmatprep.mubr.f32.mxu0 0.0
    %235 = vmatmul.mubr.f32.gmra.mxu0 %v86
    %v236 = vpop.f32.mrf.mxu0
    %v237 = vadd.f32 0.0, %v236
    %v238 = vpop.f32.mrf.mxu0
    %239 = vmatprep.mubr.f32.mxu0 0.0
    %240 = vmatmul.mubr.f32.gmra.mxu0 %v87
    %v241 = vpop.f32.mrf.mxu0
    %v242 = vadd.f32 0.0, %v241
    %v243 = vpop.f32.mrf.mxu0
    %244 = vmatprep.mubr.f32.mxu0 0.0
    %245 = vmatmul.mubr.f32.gmra.mxu0 %v88
    %v246 = vpop.f32.mrf.mxu0
    %v247 = vadd.f32 0.0, %v246
    %v248 = vpop.f32.mrf.mxu0
    %249 = vdwg.mxu0
    %v250 = vld [vmem:[#allocation7] sm:$0xff]
    %v251 = vld [vmem:[#allocation7 + $0x8] sm:$0xff]
    %v252 = vld [vmem:[#allocation7 + $0x10] sm:$0xff]
    %v253 = vld [vmem:[#allocation7 + $0x18] sm:$0xff]
    %v254 = vld [vmem:[#allocation7 + $0x20] sm:$0xff]
    %v255 = vld [vmem:[#allocation7 + $0x28] sm:$0xff]
    %v256 = vld [vmem:[#allocation7 + $0x30] sm:$0xff]
    %v257 = vld [vmem:[#allocation7 + $0x38] sm:$0xff]
    %v258 = vld [vmem:[#allocation7 + $0x40] sm:$0xff]
    %v259 = vld [vmem:[#allocation7 + $0x48] sm:$0xff]
    %v260 = vld [vmem:[#allocation7 + $0x50] sm:$0xff]
    %v261 = vld [vmem:[#allocation7 + $0x58] sm:$0xff]
    %v262 = vld [vmem:[#allocation7 + $0x60] sm:$0xff]
    %v263 = vld [vmem:[#allocation7 + $0x68] sm:$0xff]
    %v264 = vld [vmem:[#allocation7 + $0x70] sm:$0xff]
    %v265 = vld [vmem:[#allocation7 + $0x78] sm:$0xff]
    %266 = vmatprep.subr.mxu0 0.0
    %267 = vmatpush1.msra.mxu0 %v247
    %268 = vmatprep.subr.mxu0 0.0
    %269 = vmatpush1.msra.mxu0 %v242
    %270 = vmatprep.subr.mxu0 0.0
    %271 = vmatpush1.msra.mxu0 %v237
    %272 = vmatprep.subr.mxu0 0.0
    %273 = vmatpush1.msra.mxu0 %v232
    %274 = vmatprep.subr.mxu0 0.0
    %275 = vmatpush1.msra.mxu0 %v227
    %276 = vmatprep.subr.mxu0 0.0
    %277 = vmatpush1.msra.mxu0 %v222
    %278 = vmatprep.subr.mxu0 0.0
    %279 = vmatpush1.msra.mxu0 %v217
    %280 = vmatprep.subr.mxu0 0.0
    %281 = vmatpush1.msra.mxu0 %v212
    %282 = vmatprep.subr.mxu0 0.0
    %283 = vmatpush1.msra.mxu0 %v207
    %284 = vmatprep.subr.mxu0 0.0
    %285 = vmatpush1.msra.mxu0 %v202
    %286 = vmatprep.subr.mxu0 0.0
    %287 = vmatpush1.msra.mxu0 %v197
    %288 = vmatprep.subr.mxu0 0.0
    %289 = vmatpush1.msra.mxu0 %v192
    %290 = vmatprep.subr.mxu0 0.0
    %291 = vmatpush1.msra.mxu0 %v187
    %292 = vmatprep.subr.mxu0 0.0
    %293 = vmatpush1.msra.mxu0 %v182
    %294 = vmatprep.subr.mxu0 0.0
    %295 = vmatpush1.msra.mxu0 %v177
    %296 = vmatprep.subr.mxu0 0.0
    %297 = vmatpush1.msra.mxu0 %v172
    %298 = vmatprep.subr.mxu0 0.0
    %299 = vmatpush2.msra.mxu0 0.0
    %300 = vmatprep.subr.mxu0 0.0
    %301 = vmatpush2.msra.mxu0 0.0
    %302 = vmatprep.subr.mxu0 0.0
    %303 = vmatpush2.msra.mxu0 0.0
    %304 = vmatprep.subr.mxu0 0.0
    %305 = vmatpush2.msra.mxu0 0.0
    %306 = vmatprep.subr.mxu0 0.0
    %307 = vmatpush2.msra.mxu0 0.0
    %308 = vmatprep.subr.mxu0 0.0
    %309 = vmatpush2.msra.mxu0 0.0
    %310 = vmatprep.subr.mxu0 0.0
    %311 = vmatpush2.msra.mxu0 0.0
    %312 = vmatprep.subr.mxu0 0.0
    %313 = vmatpush2.msra.mxu0 0.0
    %314 = vmatprep.subr.mxu0 0.0
    %315 = vmatpush2.msra.mxu0 0.0
    %316 = vmatprep.subr.mxu0 0.0
    %317 = vmatpush2.msra.mxu0 0.0
    %318 = vmatprep.subr.mxu0 0.0
    %319 = vmatpush2.msra.mxu0 0.0
    %320 = vmatprep.subr.mxu0 0.0
    %321 = vmatpush2.msra.mxu0 0.0
    %322 = vmatprep.subr.mxu0 0.0
    %323 = vmatpush2.msra.mxu0 0.0
    %324 = vmatprep.subr.mxu0 0.0
    %325 = vmatpush2.msra.mxu0 0.0
    %326 = vmatprep.subr.mxu0 0.0
    %327 = vmatpush2.msra.mxu0 0.0
    %328 = vmatprep.subr.mxu0 0.0
    %329 = vmatpush2.msra.mxu0 0.0
    %330 = vmatprep.mubr.f32.mxu0 0.0
    %331 = vmatmul.mubr.f32.gmra.mxu0 %v250
    %v332 = vpop.f32.mrf.mxu0
    %v333 = vadd.f32 0.0, %v332
    %v334 = vpop.f32.mrf.mxu0
    %335 = vmatprep.mubr.f32.mxu0 0.0
    %336 = vmatmul.mubr.f32.gmra.mxu0 %v251
    %v337 = vpop.f32.mrf.mxu0
    %v338 = vadd.f32 0.0, %v337
    %v339 = vpop.f32.mrf.mxu0
    %340 = vmatprep.mubr.f32.mxu0 0.0
    %341 = vmatmul.mubr.f32.gmra.mxu0 %v252
    %v342 = vpop.f32.mrf.mxu0
    %v343 = vadd.f32 0.0, %v342
    %v344 = vpop.f32.mrf.mxu0
    %345 = vmatprep.mubr.f32.mxu0 0.0
    %346 = vmatmul.mubr.f32.gmra.mxu0 %v253
    %v347 = vpop.f32.mrf.mxu0
    %v348 = vadd.f32 0.0, %v347
    %v349 = vpop.f32.mrf.mxu0
    %350 = vmatprep.mubr.f32.mxu0 0.0
    %351 = vmatmul.mubr.f32.gmra.mxu0 %v254
    %v352 = vpop.f32.mrf.mxu0
    %v353 = vadd.f32 0.0, %v352
    %v354 = vpop.f32.mrf.mxu0
    %355 = vmatprep.mubr.f32.mxu0 0.0
    %356 = vmatmul.mubr.f32.gmra.mxu0 %v255
    %v357 = vpop.f32.mrf.mxu0
    %v358 = vadd.f32 0.0, %v357
    %v359 = vpop.f32.mrf.mxu0
    %360 = vmatprep.mubr.f32.mxu0 0.0
    %361 = vmatmul.mubr.f32.gmra.mxu0 %v256
    %v362 = vpop.f32.mrf.mxu0
    %v363 = vadd.f32 0.0, %v362
    %v364 = vpop.f32.mrf.mxu0
    %365 = vmatprep.mubr.f32.mxu0 0.0
    %366 = vmatmul.mubr.f32.gmra.mxu0 %v257
    %v367 = vpop.f32.mrf.mxu0
    %v368 = vadd.f32 0.0, %v367
    %v369 = vpop.f32.mrf.mxu0
    %370 = vmatprep.mubr.f32.mxu0 0.0
    %371 = vmatmul.mubr.f32.gmra.mxu0 %v258
    %v372 = vpop.f32.mrf.mxu0
    %v373 = vadd.f32 0.0, %v372
    %v374 = vpop.f32.mrf.mxu0
    %375 = vmatprep.mubr.f32.mxu0 0.0
    %376 = vmatmul.mubr.f32.gmra.mxu0 %v259
    %v377 = vpop.f32.mrf.mxu0
    %v378 = vadd.f32 0.0, %v377
    %v379 = vpop.f32.mrf.mxu0
    %380 = vmatprep.mubr.f32.mxu0 0.0
    %381 = vmatmul.mubr.f32.gmra.mxu0 %v260
    %v382 = vpop.f32.mrf.mxu0
    %v383 = vadd.f32 0.0, %v382
    %v384 = vpop.f32.mrf.mxu0
    %385 = vmatprep.mubr.f32.mxu0 0.0
    %386 = vmatmul.mubr.f32.gmra.mxu0 %v261
    %v387 = vpop.f32.mrf.mxu0
    %v388 = vadd.f32 0.0, %v387
    %v389 = vpop.f32.mrf.mxu0
    %390 = vmatprep.mubr.f32.mxu0 0.0
    %391 = vmatmul.mubr.f32.gmra.mxu0 %v262
    %v392 = vpop.f32.mrf.mxu0
    %v393 = vadd.f32 0.0, %v392
    %v394 = vpop.f32.mrf.mxu0
    %395 = vmatprep.mubr.f32.mxu0 0.0
    %396 = vmatmul.mubr.f32.gmra.mxu0 %v263
    %v397 = vpop.f32.mrf.mxu0
    %v398 = vadd.f32 0.0, %v397
    %v399 = vpop.f32.mrf.mxu0
    %400 = vmatprep.mubr.f32.mxu0 0.0
    %401 = vmatmul.mubr.f32.gmra.mxu0 %v264
    %v402 = vpop.f32.mrf.mxu0
    %v403 = vadd.f32 0.0, %v402
    %v404 = vpop.f32.mrf.mxu0
    %405 = vmatprep.mubr.f32.mxu0 0.0
    %406 = vmatmul.mubr.f32.gmra.mxu0 %v265
    %v407 = vpop.f32.mrf.mxu0
    %v408 = vadd.f32 0.0, %v407
    %v409 = vpop.f32.mrf.mxu0
    %410 = vdwg.mxu0
    %v411 = vld [vmem:[#allocation2] sm:$0xff]
    %v412 = vld [vmem:[#allocation2 + $0x8] sm:$0xff]
    %v413 = vld [vmem:[#allocation2 + $0x10] sm:$0xff]
    %v414 = vld [vmem:[#allocation2 + $0x18] sm:$0xff]
    %v415 = vld [vmem:[#allocation2 + $0x20] sm:$0xff]
    %v416 = vld [vmem:[#allocation2 + $0x28] sm:$0xff]
    %v417 = vld [vmem:[#allocation2 + $0x30] sm:$0xff]
    %v418 = vld [vmem:[#allocation2 + $0x38] sm:$0xff]
    %v419 = vld [vmem:[#allocation2 + $0x40] sm:$0xff]
    %v420 = vld [vmem:[#allocation2 + $0x48] sm:$0xff]
    %v421 = vld [vmem:[#allocation2 + $0x50] sm:$0xff]
    %v422 = vld [vmem:[#allocation2 + $0x58] sm:$0xff]
    %v423 = vld [vmem:[#allocation2 + $0x60] sm:$0xff]
    %v424 = vld [vmem:[#allocation2 + $0x68] sm:$0xff]
    %v425 = vld [vmem:[#allocation2 + $0x70] sm:$0xff]
    %v426 = vld [vmem:[#allocation2 + $0x78] sm:$0xff]
    %v427 = vadd.f32 %v411, %v333
    %v428 = vadd.f32 %v412, %v338
    %v429 = vadd.f32 %v413, %v343
    %v430 = vadd.f32 %v414, %v348
    %v431 = vadd.f32 %v415, %v353
    %v432 = vadd.f32 %v416, %v358
    %v433 = vadd.f32 %v417, %v363
    %v434 = vadd.f32 %v418, %v368
    %v435 = vadd.f32 %v419, %v373
    %v436 = vadd.f32 %v420, %v378
    %v437 = vadd.f32 %v421, %v383
    %v438 = vadd.f32 %v422, %v388
    %v439 = vadd.f32 %v423, %v393
    %v440 = vadd.f32 %v424, %v398
    %v441 = vadd.f32 %v425, %v403
    %v442 = vadd.f32 %v426, %v408
    %v443 = vpack.c.bf16 %v428, %v427
    %v444 = vpack.c.bf16 %v430, %v429
    %v445 = vpack.c.bf16 %v432, %v431
    %v446 = vpack.c.bf16 %v434, %v433
    %v447 = vpack.c.bf16 %v436, %v435
    %v448 = vpack.c.bf16 %v438, %v437
    %v449 = vpack.c.bf16 %v440, %v439
    %v450 = vpack.c.bf16 %v442, %v441
    %v459 = vunpack.c.l.b16 %v443
    %v460 = vunpack.c.h.b16 %v443
    %v461 = vunpack.c.l.b16 %v444
    %v462 = vunpack.c.h.b16 %v444
    %v463 = vunpack.c.l.b16 %v445
    %v464 = vunpack.c.h.b16 %v445
    %v465 = vunpack.c.l.b16 %v446
    %v466 = vunpack.c.h.b16 %v446
    %v467 = vunpack.c.l.b16 %v447
    %v468 = vunpack.c.h.b16 %v447
    %v469 = vunpack.c.l.b16 %v448
    %v470 = vunpack.c.h.b16 %v448
    %v471 = vunpack.c.l.b16 %v449
    %v472 = vunpack.c.h.b16 %v449
    %v473 = vunpack.c.l.b16 %v450
    %v474 = vunpack.c.h.b16 %v450
    %v475 = vpack.c.b16 %v459, %v459
    %v476 = vpack.c.b16 %v460, %v460
    %v477 = vpack.c.b16 %v461, %v461
    %v478 = vpack.c.b16 %v462, %v462
    %v479 = vpack.c.b16 %v463, %v463
    %v480 = vpack.c.b16 %v464, %v464
    %v481 = vpack.c.b16 %v465, %v465
    %v482 = vpack.c.b16 %v466, %v466
    %v483 = vpack.c.b16 %v467, %v467
    %v484 = vpack.c.b16 %v468, %v468
    %v485 = vpack.c.b16 %v469, %v469
    %v486 = vpack.c.b16 %v470, %v470
    %v487 = vpack.c.b16 %v471, %v471
    %v488 = vpack.c.b16 %v472, %v472
    %v489 = vpack.c.b16 %v473, %v473
    %v490 = vpack.c.b16 %v474, %v474
    %507 = vst [vmem:[#allocation10] sm:$0xf] %v475
    %508 = vst [vmem:[#allocation10 + $0x4] sm:$0xf] %v476
    %509 = vst [vmem:[#allocation10 + $0x8] sm:$0xf] %v477
    %510 = vst [vmem:[#allocation10 + $0xc] sm:$0xf] %v478
    %511 = vst [vmem:[#allocation10 + $0x10] sm:$0xf] %v479
    %512 = vst [vmem:[#allocation10 + $0x14] sm:$0xf] %v480
    %513 = vst [vmem:[#allocation10 + $0x18] sm:$0xf] %v481
    %514 = vst [vmem:[#allocation10 + $0x1c] sm:$0xf] %v482
    %515 = vst [vmem:[#allocation10 + $0x20] sm:$0xf] %v483
    %516 = vst [vmem:[#allocation10 + $0x24] sm:$0xf] %v484
    %517 = vst [vmem:[#allocation10 + $0x28] sm:$0xf] %v485
    %518 = vst [vmem:[#allocation10 + $0x2c] sm:$0xf] %v486
    %519 = vst [vmem:[#allocation10 + $0x30] sm:$0xf] %v487
    %520 = vst [vmem:[#allocation10 + $0x34] sm:$0xf] %v488
    %521 = vst [vmem:[#allocation10 + $0x38] sm:$0xf] %v489
    %522 = vst [vmem:[#allocation10 + $0x3c] sm:$0xf] %v490
    // Predicated region
    $region34: #{tpu_custom_call.1} parent=1 // pred_check
      _
    $region35: #{tpu_custom_call.1} parent=1 // pred_check_branch
      %524 = sbr.rel (0) target = $region37
    $region36: #{tpu_custom_call.1} parent=1 // pred_region
      %s526 = ssub.s32 1024, 1024
      %527 = vsyncadd [#allocation4], %s526
      %s528 = sshll.u32 [#allocation10], 4
      %s529 = int_to_ptr.vmem [resolvable:$true] %s528
      %534 = dma.vmem_to_hbm [thread:$0]  %s529, 1024, %s4, [#allocation4], 64, 64, 4
    $region37: #{tpu_custom_call.1} parent=1 // pred_fallthru
      _
    // Predicated region
    $region38: #{tpu_custom_call.1} parent=1 // pred_check
      _
    $region39: #{tpu_custom_call.1} parent=1 // pred_check_branch
      %536 = sbr.rel (0) target = $region41
    $region40: #{tpu_custom_call.1} parent=1 // pred_region
      %537 = dma.done [#allocation4], 1024
    $region41: #{tpu_custom_call.1} parent=1 // pred_fallthru
      _
    %538 = vsyncpa [#allocation3], 1
    %539 = vsyncpa [#allocation6], 1
    %540 = vsyncpa [#allocation9], 1
    %541 = vsyncpa [#allocation4], 1

</llo_original>
